<compile_context>
chip_gen: v5e
topology: v5e:2x2
jax: 0.10.0
libtpu: 0.0.40
codegen_flags: <defaults>
</compile_context>

<pallas_src>
import jax
import jax.numpy as jnp
from jax import lax
from jax.experimental import pallas as pl
from jax.experimental.pallas import tpu as pltpu

N_FEAT = 76
SLAB_ROWS = 8     # (8, 128) f32 == exactly one vreg
SLAB_LANES = 128


def _leaky_relu(v, slope=0.2):
    return jnp.where(v > 0, v, slope * v)


def freq_net_kernel(
    x_ref,                                                   # (1, N, 76) f32 (one bag)
    w1_ref, b1_ref, w2_ref, b2_ref, w3_ref, b3_ref,          # featureExtract (w: bf16, b: f32)
    wa1_ref, ba1_ref, wa2_ref, ba2_ref,                      # attention
    wc1_ref, bc1_ref, wc2_ref, bc2_ref, wc3_ref, bc3_ref,    # classify (f32, VPU path)
    out_ref,                                                 # (1, 8, 128) f32 packed slab
):
    n = x_ref.shape[1]
    x = x_ref[0].astype(jnp.bfloat16)                        # (N, 76) bf16 for the MXU

    # ---- featureExtract: Linear(76,256) -> LeakyReLU -> [Dropout=id] ->
    #                      Linear(256,128) -> LeakyReLU -> [Dropout=id] -> Linear(128,64)
    h1 = _leaky_relu(
        jnp.dot(x, w1_ref[...], preferred_element_type=jnp.float32) + b1_ref[...])
    h2 = _leaky_relu(
        jnp.dot(h1.astype(jnp.bfloat16), w2_ref[...],
                preferred_element_type=jnp.float32) + b2_ref[...])
    H = jnp.dot(h2.astype(jnp.bfloat16), w3_ref[...],
                preferred_element_type=jnp.float32) + b3_ref[...]          # (N, 64) f32

    # ---- attention: Linear(64,16) -> Tanh -> Linear(16,1)
    att = jnp.tanh(
        jnp.dot(H.astype(jnp.bfloat16), wa1_ref[...],
                preferred_element_type=jnp.float32) + ba1_ref[...])        # (N, 16) f32
    # 1-wide output column: VPU mul + lane reduce instead of an MXU matmul.
    logits = jnp.sum(att * wa2_ref[...], axis=1, keepdims=True) + ba2_ref[...]  # (N, 1)

    # softmax over the N instances (== transpose + Softmax(dim=1) in the PyTorch code)
    m = jnp.max(logits, axis=0, keepdims=True)
    e = jnp.exp(logits - m)
    aw = e / jnp.sum(e, axis=0, keepdims=True)                             # (N, 1)

    # MIL pooling: z = A @ H == sum_n aw[n] * H[n]   (VPU mul + sublane reduce)
    z = jnp.sum(aw * H, axis=0, keepdims=True)                             # (1, 64)

    # ---- classify: all layers are 1-row -> VPU broadcast-mul + reduce (no MXU).
    # Weight layouts chosen so row/column orientation alternates without transposes.
    # wc1: (32, 64) [out, in], bc1: (32, 1)
    c1 = _leaky_relu(jnp.sum(z * wc1_ref[...], axis=1, keepdims=True) + bc1_ref[...])   # (32, 1)
    # wc2: (32, 16) [in, out], bc2: (1, 16)
    c2 = _leaky_relu(jnp.sum(c1 * wc2_ref[...], axis=0, keepdims=True) + bc2_ref[...])  # (1, 16)
    # wc3: (2, 16) [out, in], bc3: (1, 2); compute the two class logits separately.
    l0 = jnp.sum(c2 * wc3_ref[0:1, :], axis=1, keepdims=True) + bc3_ref[:, 0:1]  # (1, 1)
    l1 = jnp.sum(c2 * wc3_ref[1:2, :], axis=1, keepdims=True) + bc3_ref[:, 1:2]  # (1, 1)

    # final 2-class softmax
    mc = jnp.maximum(l0, l1)
    e0 = jnp.exp(l0 - mc)
    e1 = jnp.exp(l1 - mc)
    inv = 1.0 / (e0 + e1)
    p0 = e0 * inv
    p1 = e1 * inv

    # torch.max(output, dim=1): value + argmax (first index on ties)
    y_prob = jnp.maximum(p0, p1)                                           # (1, 1)
    y_hat = jnp.where(p1 > p0, 1.0, 0.0).astype(jnp.float32)               # (1, 1)

    # Transpose-free column->row relayout of A via a masked sublane reduce
    # (avoids both an in-kernel tpu transpose and the old wrapper-side jnp.transpose).
    rows_n = lax.broadcasted_iota(jnp.int32, (n, n), 0)
    cols_n = lax.broadcasted_iota(jnp.int32, (n, n), 1)
    a_row = jnp.sum(jnp.where(rows_n == cols_n, aw, 0.0),
                    axis=0, keepdims=True)                                 # (1, N)

    # ---- pack everything into one lane-dense (8, 128) slab: single output DMA per bag.
    # row 0, lanes [0:N)  -> A (row form)
    # row 1, lanes [0:2)  -> softmax output (2 classes)
    # row 2, lane 0       -> Y_prob
    # row 3, lane 0       -> Y_hat (0.0 / 1.0; cast to int in the wrapper)
    out_ref[0] = jnp.zeros((SLAB_ROWS, SLAB_LANES), jnp.float32)
    out_ref[0, 0:1, 0:n] = a_row
    out_ref[0, 1:2, 0:1] = p0
    out_ref[0, 1:2, 1:2] = p1
    out_ref[0, 2:3, 0:1] = y_prob
    out_ref[0, 3:4, 0:1] = y_hat


# ---------------------------------------------------------------------------
# Parameters. Weights feeding the MXU are stored bf16 (fan_in, fan_out);
# the tiny VPU-path layers keep f32 and layouts that avoid in-kernel transposes.
# PyTorch nn.Linear default init: U(-1/sqrt(fan_in), 1/sqrt(fan_in)).
# ---------------------------------------------------------------------------
def init_params(key):
    def uni(k, shape, fan_in, dtype=jnp.float32):
        bound = float(fan_in) ** -0.5
        return jax.random.uniform(k, shape, jnp.float32, -bound, bound).astype(dtype)

    ks = jax.random.split(key, 16)
    # featureExtract (MXU path, bf16 weights / f32 biases)
    w1 = uni(ks[0], (76, 256), 76, jnp.bfloat16);  b1 = uni(ks[1], (1, 256), 76)
    w2 = uni(ks[2], (256, 128), 256, jnp.bfloat16); b2 = uni(ks[3], (1, 128), 256)
    w3 = uni(ks[4], (128, 64), 128, jnp.bfloat16);  b3 = uni(ks[5], (1, 64), 128)
    # attention
    wa1 = uni(ks[6], (64, 16), 64, jnp.bfloat16);   ba1 = uni(ks[7], (1, 16), 64)
    wa2 = uni(ks[8], (1, 16), 16)                           # (out=1, in) row form, f32
    ba2 = uni(ks[9], (1, 1), 16)
    # classify (VPU path, f32)
    wc1 = uni(ks[10], (32, 64), 64);  bc1 = uni(ks[11], (32, 1), 64)   # (out, in)
    wc2 = uni(ks[12], (32, 16), 32);  bc2 = uni(ks[13], (1, 16), 32)   # (in, out)
    wc3 = uni(ks[14], (2, 16), 16);   bc3 = uni(ks[15], (1, 2), 16)    # (out, in)
    return (w1, b1, w2, b2, w3, b3, wa1, ba1, wa2, ba2,
            wc1, bc1, wc2, bc2, wc3, bc3)


@jax.jit
def _freq_net_batched(xb, params):
    B, n, f = xb.shape
    in_specs = [pl.BlockSpec((1, n, f), lambda b: (b, 0, 0))]
    # Whole weight/bias arrays resident in VMEM for the entire call (no per-bag DMA,
    # no pointless double-buffering).
    in_specs += [pl.BlockSpec(memory_space=pltpu.MemorySpace.VMEM) for _ in params]

    slab = pl.pallas_call(
        freq_net_kernel,
        out_shape=jax.ShapeDtypeStruct((B, SLAB_ROWS, SLAB_LANES), jnp.float32),
        grid=(B,),
        in_specs=in_specs,
        out_specs=pl.BlockSpec((1, SLAB_ROWS, SLAB_LANES), lambda b: (b, 0, 0)),
        compiler_params=pltpu.CompilerParams(
            dimension_semantics=("parallel",),      # shard bags across TCs (v7x)
            vmem_limit_bytes=16 * 1024 * 1024,
        ),
    )(xb, *params)

    A = slab[:, 0, 0:n]                       # (B, N)
    output = slab[:, 1, 0:2]                  # (B, 2)
    y_prob = slab[:, 2, 0]                    # (B,)
    y_hat = slab[:, 3, 0].astype(jnp.int32)   # (B,)
    return y_prob, y_hat, A, output


def freq_net_forward(x, params):
    """x: (N, 76) single bag (PyTorch semantics) or (B, N, 76) batch of bags."""
    xb = x[None] if x.ndim == 2 else x
    assert xb.shape[1] <= SLAB_LANES, "N instances per bag must fit in one slab row"
    # Single bag (B=1) already yields PyTorch-shaped outputs: (1,), (1,), (1,N), (1,2).
    return _freq_net_batched(xb, params)


# ---------------------------------------------------------------------------
# Pure-JAX reference mirroring the kernel math (for correctness check).
# ---------------------------------------------------------------------------
def _reference_forward(xb, params):
    (w1, b1, w2, b2, w3, b3, wa1, ba1, wa2, ba2,
     wc1, bc1, wc2, bc2, wc3, bc3) = params

    def one(x):
        h1 = _leaky_relu(jnp.dot(x.astype(jnp.bfloat16), w1,
                                 preferred_element_type=jnp.float32) + b1)
        h2 = _leaky_relu(jnp.dot(h1.astype(jnp.bfloat16), w2,
                                 preferred_element_type=jnp.float32) + b2)
        H = jnp.dot(h2.astype(jnp.bfloat16), w3,
                    preferred_element_type=jnp.float32) + b3
        att = jnp.tanh(jnp.dot(H.astype(jnp.bfloat16), wa1,
                               preferred_element_type=jnp.float32) + ba1)
        logits = jnp.sum(att * wa2, axis=1, keepdims=True) + ba2
        aw = jax.nn.softmax(logits, axis=0)
        z = jnp.sum(aw * H, axis=0, keepdims=True)
        c1 = _leaky_relu(jnp.sum(z * wc1, axis=1, keepdims=True) + bc1)
        c2 = _leaky_relu(jnp.sum(c1 * wc2, axis=0, keepdims=True) + bc2)
        l0 = jnp.sum(c2 * wc3[0:1, :], axis=1, keepdims=True) + bc3[:, 0:1]
        l1 = jnp.sum(c2 * wc3[1:2, :], axis=1, keepdims=True) + bc3[:, 1:2]
        probs = jax.nn.softmax(jnp.concatenate([l0, l1], axis=1), axis=1)
        return aw[:, 0], probs[0]

    return jax.vmap(one)(xb)   # (B, N), (B, 2)


if __name__ == "__main__":
    key = jax.random.PRNGKey(0)
    k_params, k_x1, k_x2 = jax.random.split(key, 3)
    params = init_params(k_params)

    # --- Single bag of N=8 instances with 76 frequency features (PyTorch forward).
    x = jax.random.normal(k_x1, (8, N_FEAT), dtype=jnp.float32)
    Y_prob, Y_hat, A, output = freq_net_forward(x, params)
    jax.block_until_ready((Y_prob, Y_hat, A, output))

    assert Y_prob.shape == (1,) and Y_hat.shape == (1,)
    assert A.shape == (1, 8) and output.shape == (1, 2)
    assert abs(float(jnp.sum(A)) - 1.0) < 1e-3
    assert abs(float(jnp.sum(output)) - 1.0) < 1e-3
    assert abs(float(Y_prob[0]) - float(jnp.max(output))) < 1e-6
    assert int(Y_hat[0]) in (0, 1)

    A_ref, out_ref_probs = _reference_forward(x[None], params)
    assert bool(jnp.allclose(A, A_ref, atol=2e-3, rtol=2e-3))
    assert bool(jnp.allclose(output, out_ref_probs, atol=2e-3, rtol=2e-3))

    # --- Batched bags: grid over B with resident VMEM weights ("parallel" bag axis).
    xb = jax.random.normal(k_x2, (4, 8, N_FEAT), dtype=jnp.float32)
    Yp_b, Yh_b, A_b, out_b = freq_net_forward(xb, params)
    jax.block_until_ready((Yp_b, Yh_b, A_b, out_b))

    assert A_b.shape == (4, 8) and out_b.shape == (4, 2)
    assert bool(jnp.all(jnp.abs(jnp.sum(A_b, axis=1) - 1.0) < 1e-3))
    assert bool(jnp.all(jnp.abs(jnp.sum(out_b, axis=1) - 1.0) < 1e-3))
    A_bref, out_bref = _reference_forward(xb, params)
    assert bool(jnp.allclose(A_b, A_bref, atol=2e-3, rtol=2e-3))
    assert bool(jnp.allclose(out_b, out_bref, atol=2e-3, rtol=2e-3))

    print("KERNEL_OK")
</pallas_src>

<mosaic_0001>
module attributes {stable_mosaic.version = 11 : i64} {
  func.func @freq_net_kernel(%arg0: i32, %arg1: memref<1x8x76xf32, #tpu.memory_space<vmem>>, %arg2: memref<76x256xbf16, #tpu.memory_space<vmem>>, %arg3: memref<1x256xf32, #tpu.memory_space<vmem>>, %arg4: memref<256x128xbf16, #tpu.memory_space<vmem>>, %arg5: memref<1x128xf32, #tpu.memory_space<vmem>>, %arg6: memref<128x64xbf16, #tpu.memory_space<vmem>>, %arg7: memref<1x64xf32, #tpu.memory_space<vmem>>, %arg8: memref<64x16xbf16, #tpu.memory_space<vmem>>, %arg9: memref<1x16xf32, #tpu.memory_space<vmem>>, %arg10: memref<1x16xf32, #tpu.memory_space<vmem>>, %arg11: memref<1x1xf32, #tpu.memory_space<vmem>>, %arg12: memref<32x64xf32, #tpu.memory_space<vmem>>, %arg13: memref<32x1xf32, #tpu.memory_space<vmem>>, %arg14: memref<32x16xf32, #tpu.memory_space<vmem>>, %arg15: memref<1x16xf32, #tpu.memory_space<vmem>>, %arg16: memref<2x16xf32, #tpu.memory_space<vmem>>, %arg17: memref<1x2xf32, #tpu.memory_space<vmem>>, %arg18: memref<1x8x128xf32, #tpu.memory_space<vmem>>) attributes {dimension_semantics = [#tpu.dimension_semantics<parallel>], iteration_bounds = array<i64: 1>, scalar_prefetch = 0 : i64, scratch_operands = 0 : i64, tpu.core_type = #tpu.core_type<tc>, window_params = [{transform_indices = @transform_0, window_bounds = array<i64: 1, 8, 76>}, {pipeline_mode = #tpu.pipeline_mode<synchronous>, transform_indices = @transform_1, window_bounds = array<i64: 76, 256>}, {pipeline_mode = #tpu.pipeline_mode<synchronous>, transform_indices = @transform_2, window_bounds = array<i64: 1, 256>}, {pipeline_mode = #tpu.pipeline_mode<synchronous>, transform_indices = @transform_3, window_bounds = array<i64: 256, 128>}, {pipeline_mode = #tpu.pipeline_mode<synchronous>, transform_indices = @transform_4, window_bounds = array<i64: 1, 128>}, {pipeline_mode = #tpu.pipeline_mode<synchronous>, transform_indices = @transform_5, window_bounds = array<i64: 128, 64>}, {pipeline_mode = #tpu.pipeline_mode<synchronous>, transform_indices = @transform_6, window_bounds = array<i64: 1, 64>}, {pipeline_mode = #tpu.pipeline_mode<synchronous>, transform_indices = @transform_7, window_bounds = array<i64: 64, 16>}, {pipeline_mode = #tpu.pipeline_mode<synchronous>, transform_indices = @transform_8, window_bounds = array<i64: 1, 16>}, {pipeline_mode = #tpu.pipeline_mode<synchronous>, transform_indices = @transform_9, window_bounds = array<i64: 1, 16>}, {pipeline_mode = #tpu.pipeline_mode<synchronous>, transform_indices = @transform_10, window_bounds = array<i64: 1, 1>}, {pipeline_mode = #tpu.pipeline_mode<synchronous>, transform_indices = @transform_11, window_bounds = array<i64: 32, 64>}, {pipeline_mode = #tpu.pipeline_mode<synchronous>, transform_indices = @transform_12, window_bounds = array<i64: 32, 1>}, {pipeline_mode = #tpu.pipeline_mode<synchronous>, transform_indices = @transform_13, window_bounds = array<i64: 32, 16>}, {pipeline_mode = #tpu.pipeline_mode<synchronous>, transform_indices = @transform_14, window_bounds = array<i64: 1, 16>}, {pipeline_mode = #tpu.pipeline_mode<synchronous>, transform_indices = @transform_15, window_bounds = array<i64: 2, 16>}, {pipeline_mode = #tpu.pipeline_mode<synchronous>, transform_indices = @transform_16, window_bounds = array<i64: 1, 2>}, {transform_indices = @transform_17, window_bounds = array<i64: 1, 8, 128>}]} {
    %c0 = arith.constant 0 : index
    %c0_0 = arith.constant 0 : index
    %c0_1 = arith.constant 0 : index
    %0 = vector.load %arg1[%c0, %c0_0, %c0_1] : memref<1x8x76xf32, #tpu.memory_space<vmem>>, vector<1x8x76xf32>
    %1 = vector.shape_cast %0 : vector<1x8x76xf32> to vector<8x76xf32>
    %2 = arith.truncf %1 : vector<8x76xf32> to vector<8x76xbf16>
    %c0_2 = arith.constant 0 : index
    %c0_3 = arith.constant 0 : index
    %3 = vector.load %arg2[%c0_2, %c0_3] : memref<76x256xbf16, #tpu.memory_space<vmem>>, vector<76x256xbf16>
    %cst = arith.constant dense<0.000000e+00> : vector<8x256xf32>
    %4 = tpu.matmul %2, %3, %cst {dimension_numbers = #tpu.dot_dimension_numbers<[1], [0], [0], [1], [0, 0, 1, 1], [], []>} : vector<8x76xbf16>, vector<76x256xbf16>, vector<8x256xf32> -> vector<8x256xf32>
    %c0_4 = arith.constant 0 : index
    %c0_5 = arith.constant 0 : index
    %5 = vector.load %arg3[%c0_4, %c0_5] : memref<1x256xf32, #tpu.memory_space<vmem>>, vector<1x256xf32>
    %6 = vector.broadcast %5 : vector<1x256xf32> to vector<8x256xf32>
    %7 = arith.addf %4, %6 : vector<8x256xf32>
    %cst_6 = arith.constant 0.000000e+00 : f32
    %8 = vector.broadcast %cst_6 : f32 to vector<8x256xf32>
    %9 = arith.cmpf ogt, %7, %8 : vector<8x256xf32>
    %cst_7 = arith.constant 2.000000e-01 : f32
    %10 = vector.broadcast %cst_7 : f32 to vector<8x256xf32>
    %11 = arith.mulf %10, %7 : vector<8x256xf32>
    %12 = arith.select %9, %7, %11 : vector<8x256xi1>, vector<8x256xf32>
    %13 = arith.truncf %12 : vector<8x256xf32> to vector<8x256xbf16>
    %c0_8 = arith.constant 0 : index
    %c0_9 = arith.constant 0 : index
    %14 = vector.load %arg4[%c0_8, %c0_9] : memref<256x128xbf16, #tpu.memory_space<vmem>>, vector<256x128xbf16>
    %cst_10 = arith.constant dense<0.000000e+00> : vector<8x128xf32>
    %15 = tpu.matmul %13, %14, %cst_10 {dimension_numbers = #tpu.dot_dimension_numbers<[1], [0], [0], [1], [0, 0, 1, 1], [], []>} : vector<8x256xbf16>, vector<256x128xbf16>, vector<8x128xf32> -> vector<8x128xf32>
    %c0_11 = arith.constant 0 : index
    %c0_12 = arith.constant 0 : index
    %16 = vector.load %arg5[%c0_11, %c0_12] : memref<1x128xf32, #tpu.memory_space<vmem>>, vector<1x128xf32>
    %17 = vector.broadcast %16 : vector<1x128xf32> to vector<8x128xf32>
    %18 = arith.addf %15, %17 : vector<8x128xf32>
    %cst_13 = arith.constant 0.000000e+00 : f32
    %19 = vector.broadcast %cst_13 : f32 to vector<8x128xf32>
    %20 = arith.cmpf ogt, %18, %19 : vector<8x128xf32>
    %cst_14 = arith.constant 2.000000e-01 : f32
    %21 = vector.broadcast %cst_14 : f32 to vector<8x128xf32>
    %22 = arith.mulf %21, %18 : vector<8x128xf32>
    %23 = arith.select %20, %18, %22 : vector<8x128xi1>, vector<8x128xf32>
    %24 = arith.truncf %23 : vector<8x128xf32> to vector<8x128xbf16>
    %c0_15 = arith.constant 0 : index
    %c0_16 = arith.constant 0 : index
    %25 = vector.load %arg6[%c0_15, %c0_16] : memref<128x64xbf16, #tpu.memory_space<vmem>>, vector<128x64xbf16>
    %cst_17 = arith.constant dense<0.000000e+00> : vector<8x64xf32>
    %26 = tpu.matmul %24, %25, %cst_17 {dimension_numbers = #tpu.dot_dimension_numbers<[1], [0], [0], [1], [0, 0, 1, 1], [], []>} : vector<8x128xbf16>, vector<128x64xbf16>, vector<8x64xf32> -> vector<8x64xf32>
    %c0_18 = arith.constant 0 : index
    %c0_19 = arith.constant 0 : index
    %27 = vector.load %arg7[%c0_18, %c0_19] : memref<1x64xf32, #tpu.memory_space<vmem>>, vector<1x64xf32>
    %28 = vector.broadcast %27 : vector<1x64xf32> to vector<8x64xf32>
    %29 = arith.addf %26, %28 : vector<8x64xf32>
    %30 = arith.truncf %29 : vector<8x64xf32> to vector<8x64xbf16>
    %c0_20 = arith.constant 0 : index
    %c0_21 = arith.constant 0 : index
    %31 = vector.load %arg8[%c0_20, %c0_21] : memref<64x16xbf16, #tpu.memory_space<vmem>>, vector<64x16xbf16>
    %cst_22 = arith.constant dense<0.000000e+00> : vector<8x16xf32>
    %32 = tpu.matmul %30, %31, %cst_22 {dimension_numbers = #tpu.dot_dimension_numbers<[1], [0], [0], [1], [0, 0, 1, 1], [], []>} : vector<8x64xbf16>, vector<64x16xbf16>, vector<8x16xf32> -> vector<8x16xf32>
    %c0_23 = arith.constant 0 : index
    %c0_24 = arith.constant 0 : index
    %33 = vector.load %arg9[%c0_23, %c0_24] : memref<1x16xf32, #tpu.memory_space<vmem>>, vector<1x16xf32>
    %34 = vector.broadcast %33 : vector<1x16xf32> to vector<8x16xf32>
    %35 = arith.addf %32, %34 : vector<8x16xf32>
    %36 = math.tanh %35 : vector<8x16xf32>
    %c0_25 = arith.constant 0 : index
    %c0_26 = arith.constant 0 : index
    %37 = vector.load %arg10[%c0_25, %c0_26] : memref<1x16xf32, #tpu.memory_space<vmem>>, vector<1x16xf32>
    %38 = vector.broadcast %37 : vector<1x16xf32> to vector<8x16xf32>
    %39 = arith.mulf %36, %38 : vector<8x16xf32>
    %cst_27 = arith.constant dense<0.000000e+00> : vector<8xf32>
    %40 = vector.multi_reduction <add>, %39, %cst_27 [1] : vector<8x16xf32> to vector<8xf32>
    %41 = vector.shape_cast %40 : vector<8xf32> to vector<8x1xf32>
    %c0_28 = arith.constant 0 : index
    %c0_29 = arith.constant 0 : index
    %42 = vector.load %arg11[%c0_28, %c0_29] : memref<1x1xf32, #tpu.memory_space<vmem>>, vector<1x1xf32>
    %43 = vector.broadcast %42 : vector<1x1xf32> to vector<8x1xf32>
    %44 = arith.addf %41, %43 : vector<8x1xf32>
    %cst_30 = arith.constant dense<0xFF800000> : vector<1xf32>
    %45 = vector.multi_reduction <maximumf>, %44, %cst_30 [0] : vector<8x1xf32> to vector<1xf32>
    %46 = vector.shape_cast %45 : vector<1xf32> to vector<1x1xf32>
    %47 = vector.broadcast %46 : vector<1x1xf32> to vector<8x1xf32>
    %48 = arith.subf %44, %47 : vector<8x1xf32>
    %49 = math.exp %48 : vector<8x1xf32>
    %cst_31 = arith.constant dense<0.000000e+00> : vector<1xf32>
    %50 = vector.multi_reduction <add>, %49, %cst_31 [0] : vector<8x1xf32> to vector<1xf32>
    %51 = vector.shape_cast %50 : vector<1xf32> to vector<1x1xf32>
    %52 = vector.broadcast %51 : vector<1x1xf32> to vector<8x1xf32>
    %53 = arith.divf %49, %52 : vector<8x1xf32>
    %54 = vector.broadcast %53 : vector<8x1xf32> to vector<8x64xf32>
    %55 = arith.mulf %54, %29 : vector<8x64xf32>
    %cst_32 = arith.constant dense<0.000000e+00> : vector<64xf32>
    %56 = vector.multi_reduction <add>, %55, %cst_32 [0] : vector<8x64xf32> to vector<64xf32>
    %57 = vector.shape_cast %56 : vector<64xf32> to vector<1x64xf32>
    %c0_33 = arith.constant 0 : index
    %c0_34 = arith.constant 0 : index
    %58 = vector.load %arg12[%c0_33, %c0_34] : memref<32x64xf32, #tpu.memory_space<vmem>>, vector<32x64xf32>
    %59 = vector.broadcast %57 : vector<1x64xf32> to vector<32x64xf32>
    %60 = arith.mulf %59, %58 : vector<32x64xf32>
    %cst_35 = arith.constant dense<0.000000e+00> : vector<32xf32>
    %61 = vector.multi_reduction <add>, %60, %cst_35 [1] : vector<32x64xf32> to vector<32xf32>
    %62 = vector.shape_cast %61 : vector<32xf32> to vector<32x1xf32>
    %c0_36 = arith.constant 0 : index
    %c0_37 = arith.constant 0 : index
    %63 = vector.load %arg13[%c0_36, %c0_37] : memref<32x1xf32, #tpu.memory_space<vmem>>, vector<32x1xf32>
    %64 = arith.addf %62, %63 : vector<32x1xf32>
    %cst_38 = arith.constant 0.000000e+00 : f32
    %65 = vector.broadcast %cst_38 : f32 to vector<32x1xf32>
    %66 = arith.cmpf ogt, %64, %65 : vector<32x1xf32>
    %cst_39 = arith.constant 2.000000e-01 : f32
    %67 = vector.broadcast %cst_39 : f32 to vector<32x1xf32>
    %68 = arith.mulf %67, %64 : vector<32x1xf32>
    %69 = arith.select %66, %64, %68 : vector<32x1xi1>, vector<32x1xf32>
    %c0_40 = arith.constant 0 : index
    %c0_41 = arith.constant 0 : index
    %70 = vector.load %arg14[%c0_40, %c0_41] : memref<32x16xf32, #tpu.memory_space<vmem>>, vector<32x16xf32>
    %71 = vector.broadcast %69 : vector<32x1xf32> to vector<32x16xf32>
    %72 = arith.mulf %71, %70 : vector<32x16xf32>
    %cst_42 = arith.constant dense<0.000000e+00> : vector<16xf32>
    %73 = vector.multi_reduction <add>, %72, %cst_42 [0] : vector<32x16xf32> to vector<16xf32>
    %74 = vector.shape_cast %73 : vector<16xf32> to vector<1x16xf32>
    %c0_43 = arith.constant 0 : index
    %c0_44 = arith.constant 0 : index
    %75 = vector.load %arg15[%c0_43, %c0_44] : memref<1x16xf32, #tpu.memory_space<vmem>>, vector<1x16xf32>
    %76 = arith.addf %74, %75 : vector<1x16xf32>
    %cst_45 = arith.constant 0.000000e+00 : f32
    %77 = vector.broadcast %cst_45 : f32 to vector<1x16xf32>
    %78 = arith.cmpf ogt, %76, %77 : vector<1x16xf32>
    %cst_46 = arith.constant 2.000000e-01 : f32
    %79 = vector.broadcast %cst_46 : f32 to vector<1x16xf32>
    %80 = arith.mulf %79, %76 : vector<1x16xf32>
    %81 = arith.select %78, %76, %80 : vector<1x16xi1>, vector<1x16xf32>
    %c0_47 = arith.constant 0 : index
    %c0_48 = arith.constant 0 : index
    %82 = vector.load %arg16[%c0_47, %c0_48] : memref<2x16xf32, #tpu.memory_space<vmem>>, vector<1x16xf32>
    %83 = arith.mulf %81, %82 : vector<1x16xf32>
    %cst_49 = arith.constant dense<0.000000e+00> : vector<1xf32>
    %84 = vector.multi_reduction <add>, %83, %cst_49 [1] : vector<1x16xf32> to vector<1xf32>
    %85 = vector.shape_cast %84 : vector<1xf32> to vector<1x1xf32>
    %c0_50 = arith.constant 0 : index
    %c0_51 = arith.constant 0 : index
    %86 = vector.load %arg17[%c0_50, %c0_51] : memref<1x2xf32, #tpu.memory_space<vmem>>, vector<1x1xf32>
    %87 = arith.addf %85, %86 : vector<1x1xf32>
    %c1 = arith.constant 1 : index
    %c0_52 = arith.constant 0 : index
    %88 = vector.load %arg16[%c1, %c0_52] : memref<2x16xf32, #tpu.memory_space<vmem>>, vector<1x16xf32>
    %89 = arith.mulf %81, %88 : vector<1x16xf32>
    %cst_53 = arith.constant dense<0.000000e+00> : vector<1xf32>
    %90 = vector.multi_reduction <add>, %89, %cst_53 [1] : vector<1x16xf32> to vector<1xf32>
    %91 = vector.shape_cast %90 : vector<1xf32> to vector<1x1xf32>
    %c0_54 = arith.constant 0 : index
    %c1_55 = arith.constant 1 : index
    %92 = vector.load %arg17[%c0_54, %c1_55] : memref<1x2xf32, #tpu.memory_space<vmem>>, vector<1x1xf32>
    %93 = arith.addf %91, %92 : vector<1x1xf32>
    %94 = arith.maximumf %87, %93 : vector<1x1xf32>
    %95 = arith.subf %87, %94 : vector<1x1xf32>
    %96 = math.exp %95 : vector<1x1xf32>
    %97 = arith.subf %93, %94 : vector<1x1xf32>
    %98 = math.exp %97 : vector<1x1xf32>
    %99 = arith.addf %96, %98 : vector<1x1xf32>
    %cst_56 = arith.constant 1.000000e+00 : f32
    %100 = vector.broadcast %cst_56 : f32 to vector<1x1xf32>
    %101 = arith.divf %100, %99 : vector<1x1xf32>
    %102 = arith.mulf %96, %101 : vector<1x1xf32>
    %103 = arith.mulf %98, %101 : vector<1x1xf32>
    %104 = arith.maximumf %102, %103 : vector<1x1xf32>
    %105 = arith.cmpf ogt, %103, %102 : vector<1x1xf32>
    %cst_57 = arith.constant 1.000000e+00 : f32
    %cst_58 = arith.constant 0.000000e+00 : f32
    %106 = vector.broadcast %cst_57 : f32 to vector<1x1xf32>
    %107 = vector.broadcast %cst_58 : f32 to vector<1x1xf32>
    %108 = arith.select %105, %106, %107 : vector<1x1xi1>, vector<1x1xf32>
    %109 = tpu.iota {dimensions = array<i32: 0>} : vector<8x8xi32>
    %110 = tpu.iota {dimensions = array<i32: 1>} : vector<8x8xi32>
    %111 = arith.cmpi eq, %109, %110 : vector<8x8xi32>
    %cst_59 = arith.constant 0.000000e+00 : f32
    %112 = vector.shape_cast %53 : vector<8x1xf32> to vector<8x1xf32>
    %113 = vector.broadcast %112 : vector<8x1xf32> to vector<8x8xf32>
    %114 = vector.broadcast %cst_59 : f32 to vector<8x8xf32>
    %115 = arith.select %111, %113, %114 : vector<8x8xi1>, vector<8x8xf32>
    %cst_60 = arith.constant dense<0.000000e+00> : vector<8xf32>
    %116 = vector.multi_reduction <add>, %115, %cst_60 [0] : vector<8x8xf32> to vector<8xf32>
    %117 = vector.shape_cast %116 : vector<8xf32> to vector<1x8xf32>
    %cst_61 = arith.constant 0.000000e+00 : f32
    %118 = vector.broadcast %cst_61 : f32 to vector<8x128xf32>
    %c0_62 = arith.constant 0 : index
    %c0_63 = arith.constant 0 : index
    %c0_64 = arith.constant 0 : index
    %119 = vector.load %arg18[%c0_62, %c0_63, %c0_64] : memref<1x8x128xf32, #tpu.memory_space<vmem>>, vector<1x8x128xf32>
    %120 = vector.shape_cast %119 : vector<1x8x128xf32> to vector<8x128xf32>
    %121 = vector.shape_cast %118 : vector<8x128xf32> to vector<1x8x128xf32>
    tpu.vector_store %arg18[%c0_62, %c0_63, %c0_64], %121 {strides = array<i32>} : memref<1x8x128xf32, #tpu.memory_space<vmem>>, vector<1x8x128xf32>,
    %c0_65 = arith.constant 0 : index
    %c0_66 = arith.constant 0 : index
    %c0_67 = arith.constant 0 : index
    %122 = vector.load %arg18[%c0_65, %c0_66, %c0_67] : memref<1x8x128xf32, #tpu.memory_space<vmem>>, vector<1x1x8xf32>
    %123 = vector.shape_cast %122 : vector<1x1x8xf32> to vector<1x8xf32>
    %124 = vector.shape_cast %117 : vector<1x8xf32> to vector<1x1x8xf32>
    tpu.vector_store %arg18[%c0_65, %c0_66, %c0_67], %124 {strides = array<i32>} : memref<1x8x128xf32, #tpu.memory_space<vmem>>, vector<1x1x8xf32>,
    %c0_68 = arith.constant 0 : index
    %c1_69 = arith.constant 1 : index
    %c0_70 = arith.constant 0 : index
    %125 = vector.load %arg18[%c0_68, %c1_69, %c0_70] : memref<1x8x128xf32, #tpu.memory_space<vmem>>, vector<1x1x1xf32>
    %126 = vector.shape_cast %125 : vector<1x1x1xf32> to vector<1x1xf32>
    %127 = vector.shape_cast %102 : vector<1x1xf32> to vector<1x1x1xf32>
    tpu.vector_store %arg18[%c0_68, %c1_69, %c0_70], %127 {strides = array<i32>} : memref<1x8x128xf32, #tpu.memory_space<vmem>>, vector<1x1x1xf32>,
    %c0_71 = arith.constant 0 : index
    %c1_72 = arith.constant 1 : index
    %c1_73 = arith.constant 1 : index
    %128 = vector.load %arg18[%c0_71, %c1_72, %c1_73] : memref<1x8x128xf32, #tpu.memory_space<vmem>>, vector<1x1x1xf32>
    %129 = vector.shape_cast %128 : vector<1x1x1xf32> to vector<1x1xf32>
    %130 = vector.shape_cast %103 : vector<1x1xf32> to vector<1x1x1xf32>
    tpu.vector_store %arg18[%c0_71, %c1_72, %c1_73], %130 {strides = array<i32>} : memref<1x8x128xf32, #tpu.memory_space<vmem>>, vector<1x1x1xf32>,
    %c0_74 = arith.constant 0 : index
    %c2 = arith.constant 2 : index
    %c0_75 = arith.constant 0 : index
    %131 = vector.load %arg18[%c0_74, %c2, %c0_75] : memref<1x8x128xf32, #tpu.memory_space<vmem>>, vector<1x1x1xf32>
    %132 = vector.shape_cast %131 : vector<1x1x1xf32> to vector<1x1xf32>
    %133 = vector.shape_cast %104 : vector<1x1xf32> to vector<1x1x1xf32>
    tpu.vector_store %arg18[%c0_74, %c2, %c0_75], %133 {strides = array<i32>} : memref<1x8x128xf32, #tpu.memory_space<vmem>>, vector<1x1x1xf32>,
    %c0_76 = arith.constant 0 : index
    %c3 = arith.constant 3 : index
    %c0_77 = arith.constant 0 : index
    %134 = vector.load %arg18[%c0_76, %c3, %c0_77] : memref<1x8x128xf32, #tpu.memory_space<vmem>>, vector<1x1x1xf32>
    %135 = vector.shape_cast %134 : vector<1x1x1xf32> to vector<1x1xf32>
    %136 = vector.shape_cast %108 : vector<1x1xf32> to vector<1x1x1xf32>
    tpu.vector_store %arg18[%c0_76, %c3, %c0_77], %136 {strides = array<i32>} : memref<1x8x128xf32, #tpu.memory_space<vmem>>, vector<1x1x1xf32>,
    return
  }
  func.func @transform_0(%arg0: i32) -> (i32, i32, i32) {
    %c0_i32 = arith.constant 0 : i32
    %c0_i32_0 = arith.constant 0 : i32
    %c0_i32_1 = arith.constant 0 : i32
    return %arg0, %c0_i32, %c0_i32_0 : i32, i32, i32
  }
  func.func @transform_1(%arg0: i32) -> (i32, i32) {
    %c0_i32 = arith.constant 0 : i32
    %c0_i32_0 = arith.constant 0 : i32
    %c0_i32_1 = arith.constant 0 : i32
    return %c0_i32, %c0_i32_0 : i32, i32
  }
  func.func @transform_2(%arg0: i32) -> (i32, i32) {
    %c0_i32 = arith.constant 0 : i32
    %c0_i32_0 = arith.constant 0 : i32
    %c0_i32_1 = arith.constant 0 : i32
    return %c0_i32, %c0_i32_0 : i32, i32
  }
  func.func @transform_3(%arg0: i32) -> (i32, i32) {
    %c0_i32 = arith.constant 0 : i32
    %c0_i32_0 = arith.constant 0 : i32
    %c0_i32_1 = arith.constant 0 : i32
    return %c0_i32, %c0_i32_0 : i32, i32
  }
  func.func @transform_4(%arg0: i32) -> (i32, i32) {
    %c0_i32 = arith.constant 0 : i32
    %c0_i32_0 = arith.constant 0 : i32
    %c0_i32_1 = arith.constant 0 : i32
    return %c0_i32, %c0_i32_0 : i32, i32
  }
  func.func @transform_5(%arg0: i32) -> (i32, i32) {
    %c0_i32 = arith.constant 0 : i32
    %c0_i32_0 = arith.constant 0 : i32
    %c0_i32_1 = arith.constant 0 : i32
    return %c0_i32, %c0_i32_0 : i32, i32
  }
  func.func @transform_6(%arg0: i32) -> (i32, i32) {
    %c0_i32 = arith.constant 0 : i32
    %c0_i32_0 = arith.constant 0 : i32
    %c0_i32_1 = arith.constant 0 : i32
    return %c0_i32, %c0_i32_0 : i32, i32
  }
  func.func @transform_7(%arg0: i32) -> (i32, i32) {
    %c0_i32 = arith.constant 0 : i32
    %c0_i32_0 = arith.constant 0 : i32
    %c0_i32_1 = arith.constant 0 : i32
    return %c0_i32, %c0_i32_0 : i32, i32
  }
  func.func @transform_8(%arg0: i32) -> (i32, i32) {
    %c0_i32 = arith.constant 0 : i32
    %c0_i32_0 = arith.constant 0 : i32
    %c0_i32_1 = arith.constant 0 : i32
    return %c0_i32, %c0_i32_0 : i32, i32
  }
  func.func @transform_9(%arg0: i32) -> (i32, i32) {
    %c0_i32 = arith.constant 0 : i32
    %c0_i32_0 = arith.constant 0 : i32
    %c0_i32_1 = arith.constant 0 : i32
    return %c0_i32, %c0_i32_0 : i32, i32
  }
  func.func @transform_10(%arg0: i32) -> (i32, i32) {
    %c0_i32 = arith.constant 0 : i32
    %c0_i32_0 = arith.constant 0 : i32
    %c0_i32_1 = arith.constant 0 : i32
    return %c0_i32, %c0_i32_0 : i32, i32
  }
  func.func @transform_11(%arg0: i32) -> (i32, i32) {
    %c0_i32 = arith.constant 0 : i32
    %c0_i32_0 = arith.constant 0 : i32
    %c0_i32_1 = arith.constant 0 : i32
    return %c0_i32, %c0_i32_0 : i32, i32
  }
  func.func @transform_12(%arg0: i32) -> (i32, i32) {
    %c0_i32 = arith.constant 0 : i32
    %c0_i32_0 = arith.constant 0 : i32
    %c0_i32_1 = arith.constant 0 : i32
    return %c0_i32, %c0_i32_0 : i32, i32
  }
  func.func @transform_13(%arg0: i32) -> (i32, i32) {
    %c0_i32 = arith.constant 0 : i32
    %c0_i32_0 = arith.constant 0 : i32
    %c0_i32_1 = arith.constant 0 : i32
    return %c0_i32, %c0_i32_0 : i32, i32
  }
  func.func @transform_14(%arg0: i32) -> (i32, i32) {
    %c0_i32 = arith.constant 0 : i32
    %c0_i32_0 = arith.constant 0 : i32
    %c0_i32_1 = arith.constant 0 : i32
    return %c0_i32, %c0_i32_0 : i32, i32
  }
  func.func @transform_15(%arg0: i32) -> (i32, i32) {
    %c0_i32 = arith.constant 0 : i32
    %c0_i32_0 = arith.constant 0 : i32
    %c0_i32_1 = arith.constant 0 : i32
    return %c0_i32, %c0_i32_0 : i32, i32
  }
  func.func @transform_16(%arg0: i32) -> (i32, i32) {
    %c0_i32 = arith.constant 0 : i32
    %c0_i32_0 = arith.constant 0 : i32
    %c0_i32_1 = arith.constant 0 : i32
    return %c0_i32, %c0_i32_0 : i32, i32
  }
  func.func @transform_17(%arg0: i32) -> (i32, i32, i32) {
    %c0_i32 = arith.constant 0 : i32
    %c0_i32_0 = arith.constant 0 : i32
    %c0_i32_1 = arith.constant 0 : i32
    return %arg0, %c0_i32, %c0_i32_0 : i32, i32, i32
  }
}

</mosaic_0001>

<llo_original>
// kernel: _freq_net_batched.1
$region0: #{_freq_net_batched.1}
  #allocation0 [shape = 'u32[]', space=smem, size = 0x4, offset = 0x4, fixed_abs, tag = 'smem constant byte address 0x4 - core index']
  #allocation1 [shape = 'u32[72,128]{1,0:T(1,128)}', space=vmem, size = 0x9000, scoped, tag = 'internal scratch']
  #allocation2 [shape = 'f32[1,1]{1,0:T(1,128)S(1)}', space=vmem, size = 0x200, scoped, tag = 'scoped memory for _freq_net_batched.1']
  %s0 = inlined_call_operand.vmem [shape: f32[1,8,76], index: 0, kind: input, shape index: {}]
  %s1 = inlined_call_operand.vmem [shape: bf16[76,256], index: 1, kind: input, shape index: {}]
  %s2 = inlined_call_operand.vmem [shape: f32[1,256], index: 2, kind: input, shape index: {}]
  %s3 = inlined_call_operand.hbm [shape: bf16[256,128], index: 3, kind: input, shape index: {}]
  %s4 = inlined_call_operand.vmem [shape: f32[1,128], index: 4, kind: input, shape index: {}]
  %s5 = inlined_call_operand.vmem [shape: bf16[128,64], index: 5, kind: input, shape index: {}]
  %s6 = inlined_call_operand.vmem [shape: f32[1,64], index: 6, kind: input, shape index: {}]
  %s7 = inlined_call_operand.vmem [shape: bf16[64,16], index: 7, kind: input, shape index: {}]
  %s8 = inlined_call_operand.vmem [shape: f32[1,16], index: 8, kind: input, shape index: {}]
  %s9 = inlined_call_operand.vmem [shape: f32[1,16], index: 9, kind: input, shape index: {}]
  %s10 = inlined_call_operand.<no memory space> [shape: f32[1,1], index: 10, kind: input, shape index: {}]
  %s11 = inlined_call_operand.vmem [shape: f32[32,64], index: 11, kind: input, shape index: {}]
  %s12 = inlined_call_operand.vmem [shape: f32[32,1], index: 12, kind: input, shape index: {}]
  %s13 = inlined_call_operand.vmem [shape: f32[32,16], index: 13, kind: input, shape index: {}]
  %s14 = inlined_call_operand.vmem [shape: f32[1,16], index: 14, kind: input, shape index: {}]
  %s15 = inlined_call_operand.vmem [shape: f32[2,16], index: 15, kind: input, shape index: {}]
  %s16 = inlined_call_operand.vmem [shape: f32[1,2], index: 16, kind: input, shape index: {}]
  %s17 = inlined_call_operand.vmem [shape: f32[1,8,128], index: 17, kind: output, shape index: {}]
  %s18 = sld [smem:[#allocation0]]
  $region82: #{_freq_net_batched.1} parent=0
    _
  %s20 = ssub.s32 1, %s18
  %s21 = scalar_select 0, %s20, %s18
  %v22 = vstv %s10
  %23 = vst [vmem:[#allocation2] sm:$0x1] %v22
  $region1: #{_freq_net_batched.1} parent=0
    #allocation3 [shape = 'u8[65536]{0}', space=vmem, size = 0x10000, scoped, tag = 'input window, operand 3, single buffered']
    #allocation4 [shape = 's32[1]{0}', space=sflag, size = 0x4, scoped, tag = 'scoped memory for _freq_net_batched.1']
    %24 = vsyncpa [#allocation4], 0
    // Predicated region
    $region2: #{_freq_net_batched.1} parent=1 // pred_check
      _
    $region3: #{_freq_net_batched.1} parent=1 // pred_check_branch
      %26 = sbr.rel (0) target = $region5
    $region4: #{_freq_net_batched.1} parent=1 // pred_region
      _
    $region5: #{_freq_net_batched.1} parent=1 // pred_fallthru
      _
    // Predicated region
    $region6: #{_freq_net_batched.1} parent=1 // pred_check
      _
    $region7: #{_freq_net_batched.1} parent=1 // pred_check_branch
      %28 = sbr.rel (0) target = $region9
    $region8: #{_freq_net_batched.1} parent=1 // pred_region
      _
    $region9: #{_freq_net_batched.1} parent=1 // pred_fallthru
      _
    // Predicated region
    $region10: #{_freq_net_batched.1} parent=1 // pred_check
      _
    $region11: #{_freq_net_batched.1} parent=1 // pred_check_branch
      %30 = sbr.rel (0) target = $region13
    $region12: #{_freq_net_batched.1} parent=1 // pred_region
      _
    $region13: #{_freq_net_batched.1} parent=1 // pred_fallthru
      _
    // Predicated region
    $region14: #{_freq_net_batched.1} parent=1 // pred_check
      _
    $region15: #{_freq_net_batched.1} parent=1 // pred_check_branch
      %32 = sbr.rel (0) target = $region17
    $region16: #{_freq_net_batched.1} parent=1 // pred_region
      %34 = vsyncadd [#allocation4], 0
      %s35 = sshll.u32 %s3, 4
      %s36 = int_to_ptr.hbm [resolvable:$true] %s35
      %s37 = sshll.u32 [#allocation3], 4
      %s38 = int_to_ptr.vmem [resolvable:$true] %s37
      %43 = dma.hbm_to_vmem [thread:$0]  %s36, 2048, %s38, [#allocation4], 64, 64, 4
    $region17: #{_freq_net_batched.1} parent=1 // pred_fallthru
      _
    // Predicated region
    $region18: #{_freq_net_batched.1} parent=1 // pred_check
      _
    $region19: #{_freq_net_batched.1} parent=1 // pred_check_branch
      %45 = sbr.rel (0) target = $region21
    $region20: #{_freq_net_batched.1} parent=1 // pred_region
      _
    $region21: #{_freq_net_batched.1} parent=1 // pred_fallthru
      _
    // Predicated region
    $region22: #{_freq_net_batched.1} parent=1 // pred_check
      _
    $region23: #{_freq_net_batched.1} parent=1 // pred_check_branch
      %47 = sbr.rel (0) target = $region25
    $region24: #{_freq_net_batched.1} parent=1 // pred_region
      _
    $region25: #{_freq_net_batched.1} parent=1 // pred_fallthru
      _
    // Predicated region
    $region26: #{_freq_net_batched.1} parent=1 // pred_check
      _
    $region27: #{_freq_net_batched.1} parent=1 // pred_check_branch
      %49 = sbr.rel (0) target = $region29
    $region28: #{_freq_net_batched.1} parent=1 // pred_region
      _
    $region29: #{_freq_net_batched.1} parent=1 // pred_fallthru
      _
    // Predicated region
    $region30: #{_freq_net_batched.1} parent=1 // pred_check
      _
    $region31: #{_freq_net_batched.1} parent=1 // pred_check_branch
      %51 = sbr.rel (0) target = $region33
    $region32: #{_freq_net_batched.1} parent=1 // pred_region
      _
    $region33: #{_freq_net_batched.1} parent=1 // pred_fallthru
      _
    // Predicated region
    $region34: #{_freq_net_batched.1} parent=1 // pred_check
      _
    $region35: #{_freq_net_batched.1} parent=1 // pred_check_branch
      %53 = sbr.rel (0) target = $region37
    $region36: #{_freq_net_batched.1} parent=1 // pred_region
      _
    $region37: #{_freq_net_batched.1} parent=1 // pred_fallthru
      _
    // Predicated region
    $region38: #{_freq_net_batched.1} parent=1 // pred_check
      _
    $region39: #{_freq_net_batched.1} parent=1 // pred_check_branch
      %55 = sbr.rel (0) target = $region41
    $region40: #{_freq_net_batched.1} parent=1 // pred_region
      _
    $region41: #{_freq_net_batched.1} parent=1 // pred_fallthru
      _
    // Predicated region
    $region42: #{_freq_net_batched.1} parent=1 // pred_check
      _
    $region43: #{_freq_net_batched.1} parent=1 // pred_check_branch
      %57 = sbr.rel (0) target = $region45
    $region44: #{_freq_net_batched.1} parent=1 // pred_region
      _
    $region45: #{_freq_net_batched.1} parent=1 // pred_fallthru
      _
    // Predicated region
    $region46: #{_freq_net_batched.1} parent=1 // pred_check
      _
    $region47: #{_freq_net_batched.1} parent=1 // pred_check_branch
      %59 = sbr.rel (0) target = $region49
    $region48: #{_freq_net_batched.1} parent=1 // pred_region
      _
    $region49: #{_freq_net_batched.1} parent=1 // pred_fallthru
      _
    // Predicated region
    $region50: #{_freq_net_batched.1} parent=1 // pred_check
      _
    $region51: #{_freq_net_batched.1} parent=1 // pred_check_branch
      %61 = sbr.rel (0) target = $region53
    $region52: #{_freq_net_batched.1} parent=1 // pred_region
      _
    $region53: #{_freq_net_batched.1} parent=1 // pred_fallthru
      _
    // Predicated region
    $region54: #{_freq_net_batched.1} parent=1 // pred_check
      _
    $region55: #{_freq_net_batched.1} parent=1 // pred_check_branch
      %63 = sbr.rel (0) target = $region57
    $region56: #{_freq_net_batched.1} parent=1 // pred_region
      _
    $region57: #{_freq_net_batched.1} parent=1 // pred_fallthru
      _
    // Predicated region
    $region58: #{_freq_net_batched.1} parent=1 // pred_check
      _
    $region59: #{_freq_net_batched.1} parent=1 // pred_check_branch
      %65 = sbr.rel (0) target = $region61
    $region60: #{_freq_net_batched.1} parent=1 // pred_region
      _
    $region61: #{_freq_net_batched.1} parent=1 // pred_fallthru
      _
    // Predicated region
    $region62: #{_freq_net_batched.1} parent=1 // pred_check
      _
    $region63: #{_freq_net_batched.1} parent=1 // pred_check_branch
      %67 = sbr.rel (0) target = $region65
    $region64: #{_freq_net_batched.1} parent=1 // pred_region
      _
    $region65: #{_freq_net_batched.1} parent=1 // pred_fallthru
      _
    // Predicated region
    $region66: #{_freq_net_batched.1} parent=1 // pred_check
      _
    $region67: #{_freq_net_batched.1} parent=1 // pred_check_branch
      %69 = sbr.rel (0) target = $region69
    $region68: #{_freq_net_batched.1} parent=1 // pred_region
      _
    $region69: #{_freq_net_batched.1} parent=1 // pred_fallthru
      _
    // Predicated region
    $region70: #{_freq_net_batched.1} parent=1 // pred_check
      _
    $region71: #{_freq_net_batched.1} parent=1 // pred_check_branch
      %71 = sbr.rel (0) target = $region73
    $region72: #{_freq_net_batched.1} parent=1 // pred_region
      %73 = dma.done [#allocation4], 2048
    $region73: #{_freq_net_batched.1} parent=1 // pred_fallthru
      _
    %v75 = vld [vmem:[%s0] sm:$0xff]
    %v76 = vpack.c.bf16 %v75, %v75
    %v77 = vld [vmem:[%s1] sm:$0xff]
    %v78 = vld [vmem:[%s1 + $0x8] sm:$0xff]
    %v79 = vld [vmem:[%s1 + $0x10] sm:$0xff]
    %v80 = vld [vmem:[%s1 + $0x18] sm:$0xff]
    %v81 = vld [vmem:[%s1 + $0x20] sm:$0xff]
    %v82 = vld [vmem:[%s1 + $0x28] sm:$0xff]
    %v83 = vld [vmem:[%s1 + $0x30] sm:$0xff]
    %v84 = vld [vmem:[%s1 + $0x38] sm:$0xff]
    %v85 = vld [vmem:[%s1 + $0x40] sm:$0xff]
    %v86 = vld [vmem:[%s1 + $0x48] sm:$0x33]
    %v87 = vld [vmem:[%s2] sm:$0x3]
    %v89 = vperm.slane %v87, 0
    %v90 = vperm.slane %v87, 1
    %v103 = vunpack.c.l.b16 %v77
    %v104 = vunpack.c.h.b16 %v77
    %v105 = vunpack.c.l.b16 %v78
    %v106 = vunpack.c.h.b16 %v78
    %v107 = vunpack.c.l.b16 %v79
    %v108 = vunpack.c.h.b16 %v79
    %v109 = vunpack.c.l.b16 %v80
    %v110 = vunpack.c.h.b16 %v80
    %v111 = vunpack.c.l.b16 %v81
    %v112 = vunpack.c.h.b16 %v81
    %v113 = vunpack.c.l.b16 %v82
    %v114 = vunpack.c.h.b16 %v82
    %v115 = vunpack.c.l.b16 %v83
    %v116 = vunpack.c.h.b16 %v83
    %v117 = vunpack.c.l.b16 %v84
    %v118 = vunpack.c.h.b16 %v84
    %v119 = vunpack.c.l.b16 %v85
    %v120 = vunpack.c.h.b16 %v85
    %v121 = vunpack.c.l.b16 %v86
    %v122 = vunpack.c.h.b16 %v86
    %v123 = vpack.c.b16 %v105, %v103
    %v124 = vpack.c.b16 %v106, %v104
    %v125 = vpack.c.b16 %v109, %v107
    %v126 = vpack.c.b16 %v110, %v108
    %v127 = vpack.c.b16 %v113, %v111
    %v128 = vpack.c.b16 %v114, %v112
    %v129 = vpack.c.b16 %v117, %v115
    %v130 = vpack.c.b16 %v118, %v116
    %v131 = vpack.c.b16 %v121, %v119
    %v132 = vpack.c.b16 %v122, %v120
    %vm141 = vcmask 621568
    %v143 = vsel %vm141, %v76, 0
    %vm145 = vcmask 1045504
    %v147 = vsel %vm145, %v131, 0
    %v150 = vsel %vm145, %v132, 0
    %152 = vmatpush.bf16.msra.mxu0 0
    %153 = vmatpush.bf16.msra.mxu0 0
    %154 = vmatpush.bf16.msra.mxu0 0
    %155 = vmatpush.bf16.msra.mxu0 %v147
    %156 = vmatpush.bf16.msra.mxu0 %v129
    %157 = vmatpush.bf16.msra.mxu0 %v127
    %158 = vmatpush.bf16.msra.mxu0 %v125
    %159 = vmatpush.bf16.msra.mxu0 %v123
    %160 = vmatmul.bf16.gmra.mxu0 %v143
    %v161 = vpop.f32.mrf.mxu0
    %v162 = vadd.f32 %v89, %v161
    %v163 = vpop.f32.mrf.mxu0
    %164 = vdwg.mxu0
    %165 = vmatpush.bf16.msra.mxu0 0
    %166 = vmatpush.bf16.msra.mxu0 0
    %167 = vmatpush.bf16.msra.mxu0 0
    %168 = vmatpush.bf16.msra.mxu0 %v150
    %169 = vmatpush.bf16.msra.mxu0 %v130
    %170 = vmatpush.bf16.msra.mxu0 %v128
    %171 = vmatpush.bf16.msra.mxu0 %v126
    %172 = vmatpush.bf16.msra.mxu0 %v124
    %173 = vmatmul.bf16.gmra.mxu0 %v143
    %v174 = vpop.f32.mrf.mxu0
    %v175 = vadd.f32 %v90, %v174
    %v176 = vpop.f32.mrf.mxu0
    %177 = vdwg.mxu0
    %vm178 = vcmp.gt.f32.partialorder %v162, 0.0
    %vm179 = vcmp.gt.f32.partialorder %v175, 0.0
    %v180 = vmul.f32 %v162, 0.2
    %v181 = vmul.f32 %v175, 0.2
    %v182 = vsel %vm178, %v162, %v180
    %v183 = vsel %vm179, %v175, %v181
    %v184 = vpack.c.bf16 %v182, %v182
    %v185 = vpack.c.bf16 %v183, %v183
    %v186 = vld [vmem:[#allocation3] sm:$0xf]
    %v187 = vld [vmem:[#allocation3 + $0x4] sm:$0xf]
    %v188 = vld [vmem:[#allocation3 + $0x8] sm:$0xf]
    %v189 = vld [vmem:[#allocation3 + $0xc] sm:$0xf]
    %v190 = vld [vmem:[#allocation3 + $0x10] sm:$0xf]
    %v191 = vld [vmem:[#allocation3 + $0x14] sm:$0xf]
    %v192 = vld [vmem:[#allocation3 + $0x18] sm:$0xf]
    %v193 = vld [vmem:[#allocation3 + $0x1c] sm:$0xf]
    %v194 = vld [vmem:[#allocation3 + $0x20] sm:$0xf]
    %v195 = vld [vmem:[#allocation3 + $0x24] sm:$0xf]
    %v196 = vld [vmem:[#allocation3 + $0x28] sm:$0xf]
    %v197 = vld [vmem:[#allocation3 + $0x2c] sm:$0xf]
    %v198 = vld [vmem:[#allocation3 + $0x30] sm:$0xf]
    %v199 = vld [vmem:[#allocation3 + $0x34] sm:$0xf]
    %v200 = vld [vmem:[#allocation3 + $0x38] sm:$0xf]
    %v201 = vld [vmem:[#allocation3 + $0x3c] sm:$0xf]
    %v202 = vld [vmem:[#allocation3 + $0x40] sm:$0xf]
    %v203 = vld [vmem:[#allocation3 + $0x44] sm:$0xf]
    %v204 = vld [vmem:[#allocation3 + $0x48] sm:$0xf]
    %v205 = vld [vmem:[#allocation3 + $0x4c] sm:$0xf]
    %v206 = vld [vmem:[#allocation3 + $0x50] sm:$0xf]
    %v207 = vld [vmem:[#allocation3 + $0x54] sm:$0xf]
    %v208 = vld [vmem:[#allocation3 + $0x58] sm:$0xf]
    %v209 = vld [vmem:[#allocation3 + $0x5c] sm:$0xf]
    %v210 = vld [vmem:[#allocation3 + $0x60] sm:$0xf]
    %v211 = vld [vmem:[#allocation3 + $0x64] sm:$0xf]
    %v212 = vld [vmem:[#allocation3 + $0x68] sm:$0xf]
    %v213 = vld [vmem:[#allocation3 + $0x6c] sm:$0xf]
    %v214 = vld [vmem:[#allocation3 + $0x70] sm:$0xf]
    %v215 = vld [vmem:[#allocation3 + $0x74] sm:$0xf]
    %v216 = vld [vmem:[#allocation3 + $0x78] sm:$0xf]
    %v217 = vld [vmem:[#allocation3 + $0x7c] sm:$0xf]
    %v218 = vld [vmem:[%s4] sm:$0x1]
    %v220 = vperm.slane %v218, 0
    %v254 = vunpack.c.l.b16 %v186
    %v255 = vunpack.c.l.b16 %v187
    %v256 = vunpack.c.l.b16 %v188
    %v257 = vunpack.c.l.b16 %v189
    %v258 = vunpack.c.l.b16 %v190
    %v259 = vunpack.c.l.b16 %v191
    %v260 = vunpack.c.l.b16 %v192
    %v261 = vunpack.c.l.b16 %v193
    %v262 = vunpack.c.l.b16 %v194
    %v263 = vunpack.c.l.b16 %v195
    %v264 = vunpack.c.l.b16 %v196
    %v265 = vunpack.c.l.b16 %v197
    %v266 = vunpack.c.l.b16 %v198
    %v267 = vunpack.c.l.b16 %v199
    %v268 = vunpack.c.l.b16 %v200
    %v269 = vunpack.c.l.b16 %v201
    %v270 = vunpack.c.l.b16 %v202
    %v271 = vunpack.c.l.b16 %v203
    %v272 = vunpack.c.l.b16 %v204
    %v273 = vunpack.c.l.b16 %v205
    %v274 = vunpack.c.l.b16 %v206
    %v275 = vunpack.c.l.b16 %v207
    %v276 = vunpack.c.l.b16 %v208
    %v277 = vunpack.c.l.b16 %v209
    %v278 = vunpack.c.l.b16 %v210
    %v279 = vunpack.c.l.b16 %v211
    %v280 = vunpack.c.l.b16 %v212
    %v281 = vunpack.c.l.b16 %v213
    %v282 = vunpack.c.l.b16 %v214
    %v283 = vunpack.c.l.b16 %v215
    %v284 = vunpack.c.l.b16 %v216
    %v285 = vunpack.c.l.b16 %v217
    %v286 = vpack.c.b16 %v255, %v254
    %v287 = vpack.c.b16 %v257, %v256
    %v288 = vpack.c.b16 %v259, %v258
    %v289 = vpack.c.b16 %v261, %v260
    %v290 = vpack.c.b16 %v263, %v262
    %v291 = vpack.c.b16 %v265, %v264
    %v292 = vpack.c.b16 %v267, %v266
    %v293 = vpack.c.b16 %v269, %v268
    %v294 = vpack.c.b16 %v271, %v270
    %v295 = vpack.c.b16 %v273, %v272
    %v296 = vpack.c.b16 %v275, %v274
    %v297 = vpack.c.b16 %v277, %v276
    %v298 = vpack.c.b16 %v279, %v278
    %v299 = vpack.c.b16 %v281, %v280
    %v300 = vpack.c.b16 %v283, %v282
    %v301 = vpack.c.b16 %v285, %v284
    %318 = vmatpush.bf16.msra.mxu0 %v293
    %319 = vmatpush.bf16.msra.mxu0 %v292
    %320 = vmatpush.bf16.msra.mxu0 %v291
    %321 = vmatpush.bf16.msra.mxu0 %v290
    %322 = vmatpush.bf16.msra.mxu0 %v289
    %323 = vmatpush.bf16.msra.mxu0 %v288
    %324 = vmatpush.bf16.msra.mxu0 %v287
    %325 = vmatpush.bf16.msra.mxu0 %v286
    %326 = vmatmul.bf16.gmra.mxu0 %v184
    %v327 = vpop.f32.mrf.mxu0
    %v328 = vadd.f32 %v220, %v327
    %v329 = vpop.f32.mrf.mxu0
    %330 = vdwg.mxu0
    %331 = vmatpush.bf16.msra.mxu0 %v301
    %332 = vmatpush.bf16.msra.mxu0 %v300
    %333 = vmatpush.bf16.msra.mxu0 %v299
    %334 = vmatpush.bf16.msra.mxu0 %v298
    %335 = vmatpush.bf16.msra.mxu0 %v297
    %336 = vmatpush.bf16.msra.mxu0 %v296
    %337 = vmatpush.bf16.msra.mxu0 %v295
    %338 = vmatpush.bf16.msra.mxu0 %v294
    %339 = vmatmul.bf16.gmra.mxu0 %v185
    %v340 = vpop.f32.mrf.mxu0
    %v341 = vadd.f32 %v328, %v340
    %v342 = vpop.f32.mrf.mxu0
    %343 = vdwg.mxu0
    %vm344 = vcmp.gt.f32.partialorder %v341, 0.0
    %v345 = vmul.f32 %v341, 0.2
    %v346 = vsel %vm344, %v341, %v345
    %v347 = vpack.c.bf16 %v346, %v346
    %v348 = vld [vmem:[%s5] sm:$0xf]
    %v349 = vld [vmem:[%s5 + $0x4] sm:$0xf]
    %v350 = vld [vmem:[%s5 + $0x8] sm:$0xf]
    %v351 = vld [vmem:[%s5 + $0xc] sm:$0xf]
    %v352 = vld [vmem:[%s5 + $0x10] sm:$0xf]
    %v353 = vld [vmem:[%s5 + $0x14] sm:$0xf]
    %v354 = vld [vmem:[%s5 + $0x18] sm:$0xf]
    %v355 = vld [vmem:[%s5 + $0x1c] sm:$0xf]
    %v356 = vld [vmem:[%s5 + $0x20] sm:$0xf]
    %v357 = vld [vmem:[%s5 + $0x24] sm:$0xf]
    %v358 = vld [vmem:[%s5 + $0x28] sm:$0xf]
    %v359 = vld [vmem:[%s5 + $0x2c] sm:$0xf]
    %v360 = vld [vmem:[%s5 + $0x30] sm:$0xf]
    %v361 = vld [vmem:[%s5 + $0x34] sm:$0xf]
    %v362 = vld [vmem:[%s5 + $0x38] sm:$0xf]
    %v363 = vld [vmem:[%s5 + $0x3c] sm:$0xf]
    %v364 = vld [vmem:[%s6] sm:$0x1]
    %v366 = vperm.slane %v364, 0
    %v384 = vunpack.c.l.b16 %v348
    %v385 = vunpack.c.l.b16 %v349
    %v386 = vunpack.c.l.b16 %v350
    %v387 = vunpack.c.l.b16 %v351
    %v388 = vunpack.c.l.b16 %v352
    %v389 = vunpack.c.l.b16 %v353
    %v390 = vunpack.c.l.b16 %v354
    %v391 = vunpack.c.l.b16 %v355
    %v392 = vunpack.c.l.b16 %v356
    %v393 = vunpack.c.l.b16 %v357
    %v394 = vunpack.c.l.b16 %v358
    %v395 = vunpack.c.l.b16 %v359
    %v396 = vunpack.c.l.b16 %v360
    %v397 = vunpack.c.l.b16 %v361
    %v398 = vunpack.c.l.b16 %v362
    %v399 = vunpack.c.l.b16 %v363
    %v400 = vpack.c.b16 %v385, %v384
    %v401 = vpack.c.b16 %v387, %v386
    %v402 = vpack.c.b16 %v389, %v388
    %v403 = vpack.c.b16 %v391, %v390
    %v404 = vpack.c.b16 %v393, %v392
    %v405 = vpack.c.b16 %v395, %v394
    %v406 = vpack.c.b16 %v397, %v396
    %v407 = vpack.c.b16 %v399, %v398
    %416 = vmatpush.bf16.msra.mxu0 %v407
    %417 = vmatpush.bf16.msra.mxu0 %v406
    %418 = vmatpush.bf16.msra.mxu0 %v405
    %419 = vmatpush.bf16.msra.mxu0 %v404
    %420 = vmatpush.bf16.msra.mxu0 %v403
    %421 = vmatpush.bf16.msra.mxu0 %v402
    %422 = vmatpush.bf16.msra.mxu0 %v401
    %423 = vmatpush.bf16.msra.mxu0 %v400
    %424 = vmatmul.bf16.gmra.mxu0 %v347
    %v425 = vpop.f32.mrf.mxu0
    %v426 = vadd.f32 %v366, %v425
    %v427 = vpop.f32.mrf.mxu0
    %428 = vdwg.mxu0
    %v429 = vpack.c.bf16 %v426, %v426
    %v430 = vld [vmem:[%s7] sm:$0xf]
    %v431 = vld [vmem:[%s7 + $0x4] sm:$0xf]
    %v432 = vld [vmem:[%s7 + $0x8] sm:$0xf]
    %v433 = vld [vmem:[%s7 + $0xc] sm:$0xf]
    %v434 = vld [vmem:[%s7 + $0x10] sm:$0xf]
    %v435 = vld [vmem:[%s7 + $0x14] sm:$0xf]
    %v436 = vld [vmem:[%s7 + $0x18] sm:$0xf]
    %v437 = vld [vmem:[%s7 + $0x1c] sm:$0xf]
    %v438 = vld [vmem:[%s8] sm:$0x1]
    %v440 = vperm.slane %v438, 0
    %v450 = vunpack.c.l.b16 %v430
    %v451 = vunpack.c.l.b16 %v431
    %v452 = vunpack.c.l.b16 %v432
    %v453 = vunpack.c.l.b16 %v433
    %v454 = vunpack.c.l.b16 %v434
    %v455 = vunpack.c.l.b16 %v435
    %v456 = vunpack.c.l.b16 %v436
    %v457 = vunpack.c.l.b16 %v437
    %v458 = vpack.c.b16 %v451, %v450
    %v459 = vpack.c.b16 %v453, %v452
    %v460 = vpack.c.b16 %v455, %v454
    %v461 = vpack.c.b16 %v457, %v456
    %vm466 = vcmask 523264
    %v468 = vsel %vm466, %v429, 0
    %470 = vmatpush.bf16.msra.mxu0 0
    %471 = vmatpush.bf16.msra.mxu0 0
    %472 = vmatpush.bf16.msra.mxu0 0
    %473 = vmatpush.bf16.msra.mxu0 0
    %474 = vmatpush.bf16.msra.mxu0 %v461
    %475 = vmatpush.bf16.msra.mxu0 %v460
    %476 = vmatpush.bf16.msra.mxu0 %v459
    %477 = vmatpush.bf16.msra.mxu0 %v458
    %478 = vmatmul.bf16.gmra.mxu0 %v468
    %v479 = vpop.f32.mrf.mxu0
    %v480 = vadd.f32 %v440, %v479
    %v481 = vpop.f32.mrf.mxu0
    %482 = vdwg.mxu0
    %v483 = vtanh.pop %v480
    %v484 = vld [vmem:[%s9] sm:$0x1]
    %v486 = vperm.slane %v484, 0
    %v488 = vmul.f32 %v483, %v486
    %vm489 = vcmask 130048
    %v490 = vsel %vm489, %v488, 0.0
    %491 = vadd.xlane.f32.xlu0 %v490
    %v492 = vpop.xlane.xlu0 %491
    %v493 = vld [vmem:[#allocation2] sm:$0x1]
    %v495 = vperm.slane %v493, 0
    %v497 = vadd.f32 %v492, %v495
    %vm498 = vcmask 7168
    %v499 = vsel %vm498, %v497, -inf
    %v500 = vrot.slane %v499, 4
    %v501 = vmax.f32 %v499, %v500
    %v502 = vrot.slane %v501, 2
    %v503 = vmax.f32 %v501, %v502
    %v504 = vrot.slane %v503, 1
    %v505 = vmax.f32 %v503, %v504
    %v506 = vsub.f32 %v497, %v505
    %v507 = vmul.f32 %v506, 1.442695
    %v508 = vpow.pop %v507
    %v509 = vsel %vm498, %v508, 0.0
    %v510 = vrot.slane %v509, 4
    %v511 = vadd.f32 %v509, %v510
    %v512 = vrot.slane %v511, 2
    %v513 = vadd.f32 %v511, %v512
    %v514 = vrot.slane %v513, 1
    %v515 = vadd.f32 %v513, %v514
    %v516 = vrcp.pop %v515
    %v517 = vmul.f32 %v515, %v516
    %v518 = vsub.f32 1.0, %v517
    %v519 = vmul.f32 %v516, %v518
    %v520 = vadd.f32 %v516, %v519
    %vm521 = vweird.f32 %v515
    %vm522 = vweird.f32 %v516
    %vm523 = vmor %vm521, %vm522
    %v524 = vsel %vm523, %v516, %v520
    %v525 = vand.u32 2147483647, %v515
    %vm526 = vcmp.eq.f32.partialorder %v525, 8.507059e+37
    %v527 = vand.u32 %v515, 2147483648
    %v528 = vor.u32 1.1754944e-38, %v527
    %v529 = vsel %vm526, %v528, %v524
    %v530 = vmul.f32 %v508, %v529
    %532 = vset.pattern.permute.xlu0 0
    %533 = vperm.xlu0 %532, %v530
    %v534 = vpop.permute.xlu0 %533
    %v536 = vmul.f32 %v534, %v426
    %v537 = vsel %vm466, %v536, 0.0
    %v538 = vrot.slane %v537, 4
    %v539 = vadd.f32 %v537, %v538
    %v540 = vrot.slane %v539, 2
    %v541 = vadd.f32 %v539, %v540
    %v542 = vrot.slane %v541, 1
    %v543 = vadd.f32 %v541, %v542
    %v544 = vld [vmem:[%s11] sm:$0xff]
    %v545 = vld [vmem:[%s11 + $0x8] sm:$0xff]
    %v546 = vld [vmem:[%s11 + $0x10] sm:$0xff]
    %v547 = vld [vmem:[%s11 + $0x18] sm:$0xff]
    %v548 = vmul.f32 %v543, %v544
    %v549 = vmul.f32 %v543, %v545
    %v550 = vmul.f32 %v543, %v546
    %v551 = vmul.f32 %v543, %v547
    %v552 = vsel %vm466, %v548, 0.0
    %553 = vadd.xlane.f32.xlu0 %v552
    %v554 = vpop.xlane.xlu0 %553
    %v555 = vsel %vm466, %v549, 0.0
    %556 = vadd.xlane.f32.xlu0 %v555
    %v557 = vpop.xlane.xlu0 %556
    %v558 = vsel %vm466, %v550, 0.0
    %559 = vadd.xlane.f32.xlu0 %v558
    %v560 = vpop.xlane.xlu0 %559
    %v561 = vsel %vm466, %v551, 0.0
    %562 = vadd.xlane.f32.xlu0 %v561
    %v563 = vpop.xlane.xlu0 %562
    %v564 = vld [vmem:[%s12] sm:$0xff]
    %v565 = vld [vmem:[%s12 + $0x8] sm:$0xff]
    %v566 = vld [vmem:[%s12 + $0x10] sm:$0xff]
    %v567 = vld [vmem:[%s12 + $0x18] sm:$0xff]
    %v568 = vadd.f32 %v554, %v564
    %v569 = vadd.f32 %v557, %v565
    %v570 = vadd.f32 %v560, %v566
    %v571 = vadd.f32 %v563, %v567
    %vm572 = vcmp.gt.f32.partialorder %v568, 0.0
    %vm573 = vcmp.gt.f32.partialorder %v569, 0.0
    %vm574 = vcmp.gt.f32.partialorder %v570, 0.0
    %vm575 = vcmp.gt.f32.partialorder %v571, 0.0
    %v576 = vmul.f32 %v568, 0.2
    %v577 = vmul.f32 %v569, 0.2
    %v578 = vmul.f32 %v570, 0.2
    %v579 = vmul.f32 %v571, 0.2
    %v580 = vsel %vm572, %v568, %v576
    %v581 = vsel %vm573, %v569, %v577
    %v582 = vsel %vm574, %v570, %v578
    %v583 = vsel %vm575, %v571, %v579
    %v584 = vld [vmem:[%s13] sm:$0xff]
    %v585 = vld [vmem:[%s13 + $0x8] sm:$0xff]
    %v586 = vld [vmem:[%s13 + $0x10] sm:$0xff]
    %v587 = vld [vmem:[%s13 + $0x18] sm:$0xff]
    %589 = vset.pattern.permute.xlu0 0
    %590 = vperm.xlu0 %589, %v580
    %v591 = vpop.permute.xlu0 %590
    %594 = vset.pattern.permute.xlu0 0
    %595 = vperm.xlu0 %594, %v581
    %v596 = vpop.permute.xlu0 %595
    %599 = vset.pattern.permute.xlu0 0
    %600 = vperm.xlu0 %599, %v582
    %v601 = vpop.permute.xlu0 %600
    %604 = vset.pattern.permute.xlu0 0
    %605 = vperm.xlu0 %604, %v583
    %v606 = vpop.permute.xlu0 %605
    %v608 = vmul.f32 %v591, %v584
    %v609 = vmul.f32 %v596, %v585
    %v610 = vmul.f32 %v601, %v586
    %v611 = vmul.f32 %v606, %v587
    %v612 = vsel %vm489, %v608, 0.0
    %v613 = vsel %vm489, %v609, 0.0
    %v614 = vadd.f32 %v612, %v613
    %v615 = vsel %vm489, %v610, 0.0
    %v616 = vadd.f32 %v614, %v615
    %v617 = vsel %vm489, %v611, 0.0
    %v618 = vadd.f32 %v616, %v617
    %v619 = vrot.slane %v618, 4
    %v620 = vadd.f32 %v618, %v619
    %v621 = vrot.slane %v620, 2
    %v622 = vadd.f32 %v620, %v621
    %v623 = vrot.slane %v622, 1
    %v624 = vadd.f32 %v622, %v623
    %v625 = vld [vmem:[%s14] sm:$0x1]
    %v626 = vadd.f32 %v624, %v625
    %vm627 = vcmp.gt.f32.partialorder %v626, 0.0
    %v628 = vmul.f32 %v626, 0.2
    %v629 = vsel %vm627, %v626, %v628
    %v630 = vld [vmem:[%s15] sm:$0x1]
    %v631 = vmul.f32 %v629, %v630
    %vm632 = vcmask 122880
    %v633 = vsel %vm632, %v631, 0.0
    %634 = vadd.xlane.f32.xlu0 %v633
    %v635 = vpop.xlane.xlu0 %634
    %v636 = vld [vmem:[%s16] sm:$0x1]
    %v637 = vadd.f32 %v635, %v636
    %v638 = vld [vmem:[%s15 + $0x1] sm:$0x1]
    %v639 = vmul.f32 %v629, %v638
    %v640 = vsel %vm632, %v639, 0.0
    %641 = vadd.xlane.f32.xlu0 %v640
    %v642 = vpop.xlane.xlu0 %641
    %v644 = vperm.slane %v636, 0
    %645 = vrot.lane.b32.xlu0 %v644, 127
    %v646 = vpop.permute.xlu0 %645
    %v648 = vadd.f32 %v642, %v646
    %v649 = vmax.f32 %v637, %v648
    %v650 = vsub.f32 %v637, %v649
    %v651 = vmul.f32 %v650, 1.442695
    %v652 = vpow.pop %v651
    %v653 = vsub.f32 %v648, %v649
    %v654 = vmul.f32 %v653, 1.442695
    %v655 = vpow.pop %v654
    %v656 = vadd.f32 %v652, %v655
    %v657 = vrcp.pop %v656
    %v658 = vmul.f32 %v656, %v657
    %v659 = vsub.f32 1.0, %v658
    %v660 = vmul.f32 %v657, %v659
    %v661 = vadd.f32 %v657, %v660
    %vm662 = vweird.f32 %v656
    %vm663 = vweird.f32 %v657
    %vm664 = vmor %vm662, %vm663
    %v665 = vsel %vm664, %v657, %v661
    %v666 = vand.u32 2147483647, %v656
    %vm667 = vcmp.eq.f32.partialorder %v666, 8.507059e+37
    %v668 = vand.u32 %v656, 2147483648
    %v669 = vor.u32 1.1754944e-38, %v668
    %v670 = vsel %vm667, %v669, %v665
    %v671 = vmul.f32 1.0, %v670
    %v672 = vmul.f32 %v652, %v671
    %v673 = vmul.f32 %v655, %v671
    %v674 = vmax.f32 %v672, %v673
    %vm675 = vcmp.gt.f32.partialorder %v673, %v672
    %v676 = vsel %vm675, 1.0, 0.0
    %v677 = vlaneseq
    %v678 = vshrl.u32 %v677, 7
    %v679 = vlaneseq
    %v680 = vand.u32 %v679, 127
    %vm681 = vcmp.eq.s32.totalorder %v678, %v680
    %v682 = vsel %vm681, %v534, 0.0
    %vm683 = vcmask 64512
    %v684 = vsel %vm683, %v682, 0.0
    %v685 = vrot.slane %v684, 4
    %v686 = vadd.f32 %v684, %v685
    %v687 = vrot.slane %v686, 2
    %v688 = vadd.f32 %v686, %v687
    %v689 = vrot.slane %v688, 1
    %v690 = vadd.f32 %v688, %v689
    %691 = vst [vmem:[%s17] sm:$0xff] 0.0
    %vm692 = vcmask 57344
    %693 = vst.msk [vmem:[%s17] sm:$0x1] %vm692, %v690
    %vm694 = vcmask 0
    %695 = vst.msk [vmem:[%s17 + $0x1] sm:$0x1] %vm694, %v672
    %697 = vrot.lane.b32.xlu0 %v673, 1
    %v698 = vpop.permute.xlu0 %697
    %vm700 = vcmask 8200
    %701 = vst.msk [vmem:[%s17 + $0x1] sm:$0x1] %vm700, %v698
    %702 = vst.msk [vmem:[%s17 + $0x2] sm:$0x1] %vm694, %v674
    %703 = vst.msk [vmem:[%s17 + $0x3] sm:$0x1] %vm694, %v676
    // Predicated region
    $region74: #{_freq_net_batched.1} parent=1 // pred_check
      _
    $region75: #{_freq_net_batched.1} parent=1 // pred_check_branch
      %705 = sbr.rel (0) target = $region77
    $region76: #{_freq_net_batched.1} parent=1 // pred_region
      _
    $region77: #{_freq_net_batched.1} parent=1 // pred_fallthru
      _
    // Predicated region
    $region78: #{_freq_net_batched.1} parent=1 // pred_check
      _
    $region79: #{_freq_net_batched.1} parent=1 // pred_check_branch
      %707 = sbr.rel (0) target = $region81
    $region80: #{_freq_net_batched.1} parent=1 // pred_region
      _
    $region81: #{_freq_net_batched.1} parent=1 // pred_fallthru
      _
    %708 = vsyncpa [#allocation4], 1

</llo_original>
